<compile_context>
chip_gen: v7x
topology: tpu7x:2x2x1
jax: 0.10.0
libtpu: 0.0.40
codegen_flags: <defaults>
</compile_context>

<pallas_src>
import jax
import jax.numpy as jnp
from jax.experimental import pallas as pl
from jax.experimental.pallas import tpu as pltpu


def _hbm_copy_kernel(x_ref, o_ref):
    # TODO(synk): TaskHead.forward raises NotImplementedError in PyTorch; the
    # base class defines no computation, so the "head" is a pure identity.
    # Implemented as one whole-buffer HBM->HBM DMA (no grid, no VMEM bounce).
    def body(sem):
        cp = pltpu.make_async_copy(x_ref, o_ref, sem)
        cp.start()
        cp.wait()

    pl.run_scoped(body, pltpu.SemaphoreType.DMA(()))


def _pallas_identity(x):
    """Identity over `x` as a single HBM->HBM DMA inside one pallas_call.

    No grid, no padding, no reshape: the input stays in place (pl.ANY), the
    output buffer is allocated in HBM, and one DMA descriptor moves the whole
    array.  This is the minimal-cost Pallas form of a no-op head; callers that
    do not need a materialized copy should simply return `x` unchanged.
    """
    return pl.pallas_call(
        _hbm_copy_kernel,
        out_shape=jax.ShapeDtypeStruct(x.shape, x.dtype),
        in_specs=[pl.BlockSpec(memory_space=pl.ANY)],
        out_specs=pl.BlockSpec(memory_space=pl.ANY),
        cost_estimate=pl.CostEstimate(
            flops=0,
            transcendentals=0,
            bytes_accessed=2 * x.size * x.dtype.itemsize,
        ),
    )(x)


class TaskHeadPallas:
    """Pallas mirror of the abstract PyTorch TaskHead base class.

    The PyTorch base class creates no parameters and its forward() raises
    NotImplementedError; concrete subclasses define the real compute.  Config
    is stored exactly as in PyTorch, and forward is a faithful no-op head
    (node_embeddings routed through one HBM->HBM DMA, graph_embedding returned
    as-is).
    """

    def __init__(self, in_channels, hidden_dim, dropout=0.1):
        self.in_channels = in_channels
        self.hidden_dim = hidden_dim
        self.dropout = dropout
        # No parameters are created in the PyTorch __init__, so none here.

    def forward(self, node_embeddings=None, graph_embedding=None, data=None):
        out_node = None
        if node_embeddings is not None:
            assert node_embeddings.shape[-1] == self.in_channels
            out_node = _pallas_identity(node_embeddings)
        # graph_embedding is a (1, C) ~16-byte payload: returned directly
        # (a dedicated DMA descriptor would cost more than the data moved).
        out_graph = graph_embedding
        return out_node, out_graph


if __name__ == "__main__":
    in_channels = 4
    hidden_dim = 32
    num_nodes = 8

    key = jax.random.PRNGKey(0)
    k_node, k_graph = jax.random.split(key)
    node_embeddings = jax.random.normal(
        k_node, (num_nodes, in_channels), dtype=jnp.float32)
    graph_embedding = jax.random.normal(
        k_graph, (1, in_channels), dtype=jnp.float32)

    head = TaskHeadPallas(in_channels=in_channels, hidden_dim=hidden_dim, dropout=0.1)
    out_node, out_graph = head.forward(node_embeddings, graph_embedding)
    jax.block_until_ready((out_node, out_graph))

    # The base class defines no transformation, so outputs == inputs.
    assert out_node.shape == node_embeddings.shape
    assert out_node.dtype == node_embeddings.dtype
    assert jnp.allclose(out_node, node_embeddings)
    assert jnp.allclose(out_graph, graph_embedding)

    print("KERNEL_OK")
</pallas_src>

<mosaic_0001>
module attributes {stable_mosaic.version = 11 : i64} {
  func.func @_hbm_copy_kernel(%arg0: memref<8x4xf32, #tpu.memory_space<any>>, %arg1: memref<8x4xf32, #tpu.memory_space<any>>) attributes {dimension_semantics = [], scalar_prefetch = 0 : i64, scratch_operands = 0 : i64, tpu.core_type = #tpu.core_type<tc>} {
    "tpu.region"() ({
      %0 = tpu.sem_alloc : memref<!tpu.dma_semaphore, #tpu.memory_space<semaphore_mem>>
      tpu.enqueue_dma source(%arg0 : memref<8x4xf32, #tpu.memory_space<any>>) target(%arg1 : memref<8x4xf32, #tpu.memory_space<any>>) target_semaphore(%0 : memref<!tpu.dma_semaphore, #tpu.memory_space<semaphore_mem>>)
      tpu.wait_dma2 semaphore(%0 : memref<!tpu.dma_semaphore, #tpu.memory_space<semaphore_mem>>) src(%arg0 : memref<8x4xf32, #tpu.memory_space<any>>) dst(%arg1 : memref<8x4xf32, #tpu.memory_space<any>>)
      tpu.yield
    }) : () -> ()
    return
  }
}

</mosaic_0001>

<llo_original>
// kernel: tpu_custom_call.1
$region0: #{tpu_custom_call.1}
  #allocation0 [shape = 'u32[]', space=smem, size = 0x4, offset = 0x4, fixed_abs, tag = 'smem constant byte address 0x4 - core index']
  #allocation1 [shape = 'u32[144,128]{1,0:T(1,128)}', space=vmem, size = 0x12000, scoped, tag = 'internal scratch']
  #allocation3 [shape = 's32[]', space=sflag, size = 0x4, offset = 0, fixed_abs, tag = 'sflag constant byte address 0x0 - dummy sync flag']
  %s0 = inlined_call_operand.vmem [shape: f32[8,4], index: 0, kind: input, shape index: {}]
  %s1 = inlined_call_operand.vmem [shape: f32[8,4], index: 1, kind: output, shape index: {}]
  %s2 = sld [smem:[#allocation0]]
  $region37: #{tpu_custom_call.1} parent=0
    _
  %s4 = ssub.s32 1, %s2
  %s5 = scalar_select 0, %s4, %s2
  $region2: #{tpu_custom_call.1} parent=0
    #allocation2 [shape = 's32[1]{0}', space=sflag, size = 0x4, scoped, tag = 'scoped memory for tpu_custom_call.1']
    %p7 = scmp.lt.u32.totalorder 8, 8
    %p8 = pneg %p7
    // Predicated region
    $region3: #{tpu_custom_call.1} parent=2 // pred_check
      _
    $region4: #{tpu_custom_call.1} parent=2 // pred_check_branch
      %10 = sbr.rel (%p7) target = $region6
    $region5: #{tpu_custom_call.1} parent=2 // pred_region
      %s25 = sand.u32 8, 7
      %p26 = scmp.eq.s32.totalorder %s25, 0
      // Predicated region
      $region18: #{tpu_custom_call.1} parent=5 // pred_check
        %p27 = pneg %p26
      $region19: #{tpu_custom_call.1} parent=5 // pred_check_branch
        %29 = sbr.rel (%p27) target = $region21
      $region20: #{tpu_custom_call.1} parent=5 // pred_region
        loop: start=0, step=1, limit=1
        $region22: #{tpu_custom_call.1} parent=20 // loop_pre_header
          _
        $region23: #{tpu_custom_call.1} parent=20 // loop_header
          %s31 = sphi 0, %s35
          %p32 = scmp.ge.s32.totalorder %s31, 1
          %s36 = sphi %s0, %s0
          %s37 = sphi %s1, %s1
        $region24: #{tpu_custom_call.1} parent=20 // loop_header_branch
          %34 = sbr.rel (%p32) target = $region28
        $region25: #{tpu_custom_call.1} parent=20 // loop_body
          %v38 = vld [vmem:[%s36] sm:$0xff]
          %39 = vst [vmem:[%s37] sm:$0xff] %v38
        $region26: #{tpu_custom_call.1} parent=20 // loop_footer
          %s35 = sadd.s32 1, %s31
        $region27: #{tpu_custom_call.1} parent=20 // loop_footer_branch
          %30 = sbr.rel target = $region23
        $region28: #{tpu_custom_call.1} parent=20 // loop_exit
          _
      $region21: #{tpu_custom_call.1} parent=5 // pred_fallthru
        _
      %p40 = pneg %p26
      // Predicated region
      $region29: #{tpu_custom_call.1} parent=5 // pred_check
        _
      $region30: #{tpu_custom_call.1} parent=5 // pred_check_branch
        %42 = sbr.rel (%p26) target = $region32
      $region31: #{tpu_custom_call.1} parent=5 // pred_region
        %s43 = sand.u32 8, 7
      $region32: #{tpu_custom_call.1} parent=5 // pred_fallthru
        _
    $region6: #{tpu_custom_call.1} parent=2 // pred_fallthru
      _
    // Predicated region
    $region7: #{tpu_custom_call.1} parent=2 // pred_check
      %p11 = pneg %p7
    $region8: #{tpu_custom_call.1} parent=2 // pred_check_branch
      %13 = sbr.rel (%p11) target = $region10
    $region9: #{tpu_custom_call.1} parent=2 // pred_region
      %s14 = sshllo.u32 0, 8
      loop: start=0, step=1, limit=1
      $region11: #{tpu_custom_call.1} parent=9 // loop_pre_header
        _
      $region12: #{tpu_custom_call.1} parent=9 // loop_header
        %s16 = sphi 0, %s20
        %p17 = scmp.ge.s32.totalorder %s16, 1
        %s21 = sphi %s0, %s0
        %s22 = sphi %s1, %s1
      $region13: #{tpu_custom_call.1} parent=9 // loop_header_branch
        %19 = sbr.rel (%p17) target = $region17
      $region14: #{tpu_custom_call.1} parent=9 // loop_body
        %v23 = vld [vmem:[%s21] sm:%s14]
        %24 = vst [vmem:[%s22] sm:%s14] %v23
      $region15: #{tpu_custom_call.1} parent=9 // loop_footer
        %s20 = sadd.s32 1, %s16
      $region16: #{tpu_custom_call.1} parent=9 // loop_footer_branch
        %15 = sbr.rel target = $region12
      $region17: #{tpu_custom_call.1} parent=9 // loop_exit
        _
    $region10: #{tpu_custom_call.1} parent=2 // pred_fallthru
      _
    // Predicated region
    $region33: #{tpu_custom_call.1} parent=2 // pred_check
      _
    $region34: #{tpu_custom_call.1} parent=2 // pred_check_branch
      %46 = sbr.rel (0) target = $region36
    $region35: #{tpu_custom_call.1} parent=2 // pred_region
      %47 = vsyncadd [#allocation2], 128
    $region36: #{tpu_custom_call.1} parent=2 // pred_fallthru
      _
    %s48 = smul.u32 8, 1
    %s49 = sshll.u32 %s48, 4
    %50 = dma.done [#allocation2], %s49

</llo_original>
